<compile_context>
chip_gen: v7x
topology: tpu7x:2x2x1
jax: 0.10.0
libtpu: 0.0.40
codegen_flags: <defaults>
</compile_context>

<pallas_src>
import functools

import jax
import jax.numpy as jnp
from jax import lax
from jax.experimental import pallas as pl
from jax.experimental.pallas import tpu as pltpu


# ----------------------------------------------------------------------------
# Fused Pallas kernel
# ----------------------------------------------------------------------------
def double_conv_kernel(x_ref, t1_ref, t2_ref, g1_ref, b1_ref, g2_ref, b2_ref,
                       o_ref, xpad1_ref, xpad2_ref,
                       *, n_img, height, width, cout, eps):
    """Whole DoubleConv on the batch-stacked lane-dense slab.

    x_ref   : (N*H, W*Cin)         input slab
    t1_ref  : (3, W*Cin,  W*Cout)  block-Toeplitz conv1 weights (one per ky)
    t2_ref  : (3, W*Cout, W*Cout)  block-Toeplitz conv2 weights
    g*_ref  : (1, W*Cout)          BN gamma/beta tiled over the W lane-groups
    o_ref   : (N*H, W*Cout)        output slab
    xpad*_ref: (N*H+2, ...)        VMEM scratch for the 1-row H halo
    """
    nh = n_img * height
    wcl = width * cout
    inv_count = 1.0 / float(n_img * height * width)

    # Row index within each image (for halo masking at image boundaries).
    rows = lax.broadcasted_iota(jnp.int32, (nh, 1), 0)
    if height & (height - 1) == 0:
        h_idx = jnp.bitwise_and(rows, height - 1)
    else:
        h_idx = rows % height
    not_top = h_idx != 0
    not_bot = h_idx != (height - 1)

    def conv3x3(x, xpad_ref, t_ref):
        """3x3 / stride 1 / pad 1 conv: 3 batch-stacked MXU dots (one per ky)."""
        wc = x.shape[1]
        zero_row = jnp.zeros((1, wc), jnp.float32)
        # Only the two halo rows get zeros; nothing else is re-initialized.
        xpad_ref[pl.ds(0, 1), :] = zero_row
        xpad_ref[pl.ds(1, nh), :] = x
        xpad_ref[pl.ds(nh + 1, 1), :] = zero_row
        # Row-shifted operands; image-boundary rows masked to zero.
        x_prev = jnp.where(not_top, xpad_ref[pl.ds(0, nh), :], 0.0)   # x[h-1]
        x_next = jnp.where(not_bot, xpad_ref[pl.ds(2, nh), :], 0.0)   # x[h+1]
        acc = jnp.dot(x_prev, t_ref[0], preferred_element_type=jnp.float32)
        acc = acc + jnp.dot(x, t_ref[1], preferred_element_type=jnp.float32)
        acc = acc + jnp.dot(x_next, t_ref[2], preferred_element_type=jnp.float32)
        return acc

    def fold_groups(v):
        """Sum the W lane-groups per channel; result stays broadcast lane-dense.

        Rotation direction is irrelevant: subset sums of {cout, 2*cout, ...}
        cover every multiple of cout (mod W*cout) either way.
        """
        if width & (width - 1) == 0:
            out = v
            shift = cout
            while shift < wcl:
                out = out + pltpu.roll(out, shift, axis=1)
                shift *= 2
            return out
        out = v
        r = v
        for _ in range(width - 1):
            r = pltpu.roll(r, cout, axis=1)
            out = out + r
        return out

    def batchnorm_relu(y, g_t, b_t):
        """Training-mode BatchNorm2d (+ReLU), centered two-pass statistics."""
        mean = fold_groups(jnp.sum(y, axis=0, keepdims=True)) * inv_count
        yc = y - mean
        var = fold_groups(jnp.sum(yc * yc, axis=0, keepdims=True)) * inv_count
        scale = g_t / jnp.sqrt(var + eps)
        return jnp.maximum(yc * scale + b_t, 0.0)

    x = x_ref[...]
    y1 = conv3x3(x, xpad1_ref, t1_ref)
    a1 = batchnorm_relu(y1, g1_ref[...], b1_ref[...])
    y2 = conv3x3(a1, xpad2_ref, t2_ref)
    o_ref[...] = batchnorm_relu(y2, g2_ref[...], b2_ref[...]).astype(o_ref.dtype)


# ----------------------------------------------------------------------------
# pallas_call wrapper
# ----------------------------------------------------------------------------
def _double_conv_pallas(x2, t1, t2, g1t, b1t, g2t, b2t, *, n, h, w, cout,
                        eps=1e-5):
    nh, wcin = x2.shape
    wcl = t1.shape[-1]
    kernel = functools.partial(double_conv_kernel, n_img=n, height=h, width=w,
                               cout=cout, eps=eps)
    return pl.pallas_call(
        kernel,
        out_shape=jax.ShapeDtypeStruct((nh, wcl), jnp.float32),
        grid=(1,),
        in_specs=[
            pl.BlockSpec((nh, wcin), lambda i: (0, 0)),
            pl.BlockSpec((3, wcin, wcl), lambda i: (0, 0, 0)),
            pl.BlockSpec((3, wcl, wcl), lambda i: (0, 0, 0)),
            pl.BlockSpec((1, wcl), lambda i: (0, 0)),
            pl.BlockSpec((1, wcl), lambda i: (0, 0)),
            pl.BlockSpec((1, wcl), lambda i: (0, 0)),
            pl.BlockSpec((1, wcl), lambda i: (0, 0)),
        ],
        out_specs=pl.BlockSpec((nh, wcl), lambda i: (0, 0)),
        scratch_shapes=[
            pltpu.VMEM((nh + 2, wcin), jnp.float32),
            pltpu.VMEM((nh + 2, wcl), jnp.float32),
        ],
    )(x2, t1, t2, g1t, b1t, g2t, b2t)


# ----------------------------------------------------------------------------
# Weight preprocessing (hoisted out of the hot path; run once per weight set)
# ----------------------------------------------------------------------------
def _build_toeplitz(w_hwio, width):
    """Fold the W-direction taps (and W zero padding) into one matrix per ky.

    T[ky][(w + kx - 1)*Cin + ci, w*Cout + co] = w_hwio[ky, kx, ci, co];
    entries whose source column falls outside [0, W) stay zero (padding=1 in W).
    """
    _, _, cin, cout = w_hwio.shape
    taps = []
    for ky in range(3):
        t = jnp.zeros((width * cin, width * cout), w_hwio.dtype)
        for kx in range(3):
            shift = jnp.eye(width, k=1 - kx, dtype=w_hwio.dtype)   # S[w+kx-1, w]=1
            t = t + jnp.kron(shift, w_hwio[ky, kx])
        taps.append(t)
    return jnp.stack(taps)                                          # (3, W*Cin, W*Cout)


def _tile_channels(v, width):
    """(C,) per-channel vector -> (1, W*C) matching the j = w*C + c lane layout."""
    return jnp.tile(v, width).reshape(1, -1)


def prepare_params(w1_oihw, w2_oihw, g1, b1, g2, b2, width):
    w1 = jnp.transpose(w1_oihw, (2, 3, 1, 0))   # OIHW -> HWIO
    w2 = jnp.transpose(w2_oihw, (2, 3, 1, 0))
    return {
        "t1": _build_toeplitz(w1, width),
        "t2": _build_toeplitz(w2, width),
        "g1": _tile_channels(g1, width), "b1": _tile_channels(b1, width),
        "g2": _tile_channels(g2, width), "b2": _tile_channels(b2, width),
    }


@jax.jit
def double_conv(x_nchw, prep):
    """DoubleConv forward. Input/output NCHW, matching the PyTorch module."""
    n, cin, h, w = x_nchw.shape
    wcl = prep["g1"].shape[1]
    cout = wcl // w
    # NCHW -> NHWC -> batch-stacked lane-dense slab (N*H, W*Cin); reshape is free.
    x2 = jnp.transpose(x_nchw, (0, 2, 3, 1)).reshape(n * h, w * cin)
    y = _double_conv_pallas(x2, prep["t1"], prep["t2"],
                            prep["g1"], prep["b1"], prep["g2"], prep["b2"],
                            n=n, h=h, w=w, cout=cout)
    return jnp.transpose(y.reshape(n, h, w, cout), (0, 3, 1, 2))


# ----------------------------------------------------------------------------
# Pure-JAX reference (for correctness checking only)
# ----------------------------------------------------------------------------
def reference_double_conv(x_nchw, w1_oihw, w2_oihw, g1, b1, g2, b2, eps=1e-5):
    def conv(x, w_oihw):
        return lax.conv_general_dilated(
            x, w_oihw, window_strides=(1, 1), padding=((1, 1), (1, 1)),
            dimension_numbers=("NCHW", "OIHW", "NCHW"))

    def bn_relu_ref(y, gamma, beta):
        mean = jnp.mean(y, axis=(0, 2, 3), keepdims=True)
        var = jnp.mean((y - mean) ** 2, axis=(0, 2, 3), keepdims=True)
        yn = (y - mean) / jnp.sqrt(var + eps)
        yn = yn * gamma.reshape(1, -1, 1, 1) + beta.reshape(1, -1, 1, 1)
        return jnp.maximum(yn, 0.0)

    y1 = bn_relu_ref(conv(x_nchw, w1_oihw), g1, b1)
    y2 = bn_relu_ref(conv(y1, w2_oihw), g2, b2)
    return y2


# ----------------------------------------------------------------------------
# Main
# ----------------------------------------------------------------------------
if __name__ == "__main__":
    N, Cin, Cout, H, W = 2, 4, 8, 16, 16

    key = jax.random.PRNGKey(0)
    k_x, k_w1, k_w2, k_g1, k_b1, k_g2, k_b2 = jax.random.split(key, 7)

    x = jax.random.normal(k_x, (N, Cin, H, W), dtype=jnp.float32)

    # PyTorch weight layout OIHW = (Cout, Cin, 3, 3), bias=False.
    w1_oihw = 0.2 * jax.random.normal(k_w1, (Cout, Cin, 3, 3), dtype=jnp.float32)
    w2_oihw = 0.2 * jax.random.normal(k_w2, (Cout, Cout, 3, 3), dtype=jnp.float32)
    g1 = 1.0 + 0.1 * jax.random.normal(k_g1, (Cout,), dtype=jnp.float32)
    b1 = 0.1 * jax.random.normal(k_b1, (Cout,), dtype=jnp.float32)
    g2 = 1.0 + 0.1 * jax.random.normal(k_g2, (Cout,), dtype=jnp.float32)
    b2 = 0.1 * jax.random.normal(k_b2, (Cout,), dtype=jnp.float32)

    # Hoisted off the hot path: built once per weight update, not per forward.
    prep = prepare_params(w1_oihw, w2_oihw, g1, b1, g2, b2, W)

    out = double_conv(x, prep)
    out = jax.block_until_ready(out)

    ref = reference_double_conv(x, w1_oihw, w2_oihw, g1, b1, g2, b2)
    assert out.shape == (N, Cout, H, W), out.shape
    assert jnp.allclose(out, ref, rtol=1e-4, atol=1e-4), (
        float(jnp.max(jnp.abs(out - ref))))

    print("KERNEL_OK")
</pallas_src>

<mosaic_0001>
module attributes {stable_mosaic.version = 11 : i64} {
  func.func @double_conv_kernel(%arg0: i32, %arg1: memref<32x64xf32, #tpu.memory_space<vmem>>, %arg2: memref<3x64x128xf32, #tpu.memory_space<vmem>>, %arg3: memref<3x128x128xf32, #tpu.memory_space<vmem>>, %arg4: memref<1x128xf32, #tpu.memory_space<vmem>>, %arg5: memref<1x128xf32, #tpu.memory_space<vmem>>, %arg6: memref<1x128xf32, #tpu.memory_space<vmem>>, %arg7: memref<1x128xf32, #tpu.memory_space<vmem>>, %arg8: memref<32x128xf32, #tpu.memory_space<vmem>>, %arg9: memref<34x64xf32, #tpu.memory_space<vmem>>, %arg10: memref<34x128xf32, #tpu.memory_space<vmem>>) attributes {dimension_semantics = [#tpu.dimension_semantics<arbitrary>], iteration_bounds = array<i64: 1>, scalar_prefetch = 0 : i64, scratch_operands = 2 : i64, tpu.core_type = #tpu.core_type<tc>, window_params = [{pipeline_mode = #tpu.pipeline_mode<synchronous>, transform_indices = @transform_0, window_bounds = array<i64: 32, 64>}, {pipeline_mode = #tpu.pipeline_mode<synchronous>, transform_indices = @transform_1, window_bounds = array<i64: 3, 64, 128>}, {pipeline_mode = #tpu.pipeline_mode<synchronous>, transform_indices = @transform_2, window_bounds = array<i64: 3, 128, 128>}, {pipeline_mode = #tpu.pipeline_mode<synchronous>, transform_indices = @transform_3, window_bounds = array<i64: 1, 128>}, {pipeline_mode = #tpu.pipeline_mode<synchronous>, transform_indices = @transform_4, window_bounds = array<i64: 1, 128>}, {pipeline_mode = #tpu.pipeline_mode<synchronous>, transform_indices = @transform_5, window_bounds = array<i64: 1, 128>}, {pipeline_mode = #tpu.pipeline_mode<synchronous>, transform_indices = @transform_6, window_bounds = array<i64: 1, 128>}, {pipeline_mode = #tpu.pipeline_mode<synchronous>, transform_indices = @transform_7, window_bounds = array<i64: 32, 128>}]} {
    %0 = tpu.iota {dimensions = array<i32: 0>} : vector<32x1xi32>
    %c15_i32 = arith.constant 15 : i32
    %1 = vector.broadcast %c15_i32 : i32 to vector<32x1xi32>
    %2 = arith.andi %0, %1 : vector<32x1xi32>
    %c0_i32 = arith.constant 0 : i32
    %3 = vector.broadcast %c0_i32 : i32 to vector<32x1xi32>
    %4 = arith.cmpi ne, %2, %3 : vector<32x1xi32>
    %c15_i32_0 = arith.constant 15 : i32
    %5 = vector.broadcast %c15_i32_0 : i32 to vector<32x1xi32>
    %6 = arith.cmpi ne, %2, %5 : vector<32x1xi32>
    %c0 = arith.constant 0 : index
    %c0_1 = arith.constant 0 : index
    %7 = vector.load %arg1[%c0, %c0_1] : memref<32x64xf32, #tpu.memory_space<vmem>>, vector<32x64xf32>
    %cst = arith.constant 0.000000e+00 : f32
    %8 = vector.broadcast %cst : f32 to vector<1x64xf32>
    %c0_2 = arith.constant 0 : index
    %c0_3 = arith.constant 0 : index
    %9 = vector.load %arg9[%c0_2, %c0_3] : memref<34x64xf32, #tpu.memory_space<vmem>>, vector<1x64xf32>
    tpu.vector_store %arg9[%c0_2, %c0_3], %8 {strides = array<i32>} : memref<34x64xf32, #tpu.memory_space<vmem>>, vector<1x64xf32>,
    %c1 = arith.constant 1 : index
    %c0_4 = arith.constant 0 : index
    %10 = vector.load %arg9[%c1, %c0_4] : memref<34x64xf32, #tpu.memory_space<vmem>>, vector<32x64xf32>
    tpu.vector_store %arg9[%c1, %c0_4], %7 {strides = array<i32>} : memref<34x64xf32, #tpu.memory_space<vmem>>, vector<32x64xf32>,
    %c33 = arith.constant 33 : index
    %c0_5 = arith.constant 0 : index
    %11 = vector.load %arg9[%c33, %c0_5] : memref<34x64xf32, #tpu.memory_space<vmem>>, vector<1x64xf32>
    tpu.vector_store %arg9[%c33, %c0_5], %8 {strides = array<i32>} : memref<34x64xf32, #tpu.memory_space<vmem>>, vector<1x64xf32>,
    %c0_6 = arith.constant 0 : index
    %c0_7 = arith.constant 0 : index
    %12 = vector.load %arg9[%c0_6, %c0_7] : memref<34x64xf32, #tpu.memory_space<vmem>>, vector<32x64xf32>
    %cst_8 = arith.constant 0.000000e+00 : f32
    %13 = vector.shape_cast %4 : vector<32x1xi1> to vector<32x1xi1>
    %14 = vector.broadcast %13 : vector<32x1xi1> to vector<32x64xi1>
    %15 = vector.broadcast %cst_8 : f32 to vector<32x64xf32>
    %16 = arith.select %14, %12, %15 : vector<32x64xi1>, vector<32x64xf32>
    %c2 = arith.constant 2 : index
    %c0_9 = arith.constant 0 : index
    %17 = vector.load %arg9[%c2, %c0_9] : memref<34x64xf32, #tpu.memory_space<vmem>>, vector<32x64xf32>
    %cst_10 = arith.constant 0.000000e+00 : f32
    %18 = vector.shape_cast %6 : vector<32x1xi1> to vector<32x1xi1>
    %19 = vector.broadcast %18 : vector<32x1xi1> to vector<32x64xi1>
    %20 = vector.broadcast %cst_10 : f32 to vector<32x64xf32>
    %21 = arith.select %19, %17, %20 : vector<32x64xi1>, vector<32x64xf32>
    %c0_11 = arith.constant 0 : index
    %c0_12 = arith.constant 0 : index
    %c0_13 = arith.constant 0 : index
    %22 = vector.load %arg2[%c0_11, %c0_12, %c0_13] : memref<3x64x128xf32, #tpu.memory_space<vmem>>, vector<1x64x128xf32>
    %23 = vector.shape_cast %22 : vector<1x64x128xf32> to vector<64x128xf32>
    %cst_14 = arith.constant dense<0.000000e+00> : vector<32x128xf32>
    %24 = tpu.matmul %16, %23, %cst_14 {dimension_numbers = #tpu.dot_dimension_numbers<[1], [0], [0], [1], [0, 0, 1, 1], [], []>} : vector<32x64xf32>, vector<64x128xf32>, vector<32x128xf32> -> vector<32x128xf32>
    %c1_15 = arith.constant 1 : index
    %c0_16 = arith.constant 0 : index
    %c0_17 = arith.constant 0 : index
    %25 = vector.load %arg2[%c1_15, %c0_16, %c0_17] : memref<3x64x128xf32, #tpu.memory_space<vmem>>, vector<1x64x128xf32>
    %26 = vector.shape_cast %25 : vector<1x64x128xf32> to vector<64x128xf32>
    %cst_18 = arith.constant dense<0.000000e+00> : vector<32x128xf32>
    %27 = tpu.matmul %7, %26, %cst_18 {dimension_numbers = #tpu.dot_dimension_numbers<[1], [0], [0], [1], [0, 0, 1, 1], [], []>} : vector<32x64xf32>, vector<64x128xf32>, vector<32x128xf32> -> vector<32x128xf32>
    %28 = arith.addf %24, %27 : vector<32x128xf32>
    %c2_19 = arith.constant 2 : index
    %c0_20 = arith.constant 0 : index
    %c0_21 = arith.constant 0 : index
    %29 = vector.load %arg2[%c2_19, %c0_20, %c0_21] : memref<3x64x128xf32, #tpu.memory_space<vmem>>, vector<1x64x128xf32>
    %30 = vector.shape_cast %29 : vector<1x64x128xf32> to vector<64x128xf32>
    %cst_22 = arith.constant dense<0.000000e+00> : vector<32x128xf32>
    %31 = tpu.matmul %21, %30, %cst_22 {dimension_numbers = #tpu.dot_dimension_numbers<[1], [0], [0], [1], [0, 0, 1, 1], [], []>} : vector<32x64xf32>, vector<64x128xf32>, vector<32x128xf32> -> vector<32x128xf32>
    %32 = arith.addf %28, %31 : vector<32x128xf32>
    %c0_23 = arith.constant 0 : index
    %c0_24 = arith.constant 0 : index
    %33 = vector.load %arg4[%c0_23, %c0_24] : memref<1x128xf32, #tpu.memory_space<vmem>>, vector<1x128xf32>
    %c0_25 = arith.constant 0 : index
    %c0_26 = arith.constant 0 : index
    %34 = vector.load %arg5[%c0_25, %c0_26] : memref<1x128xf32, #tpu.memory_space<vmem>>, vector<1x128xf32>
    %cst_27 = arith.constant dense<0.000000e+00> : vector<128xf32>
    %35 = vector.multi_reduction <add>, %32, %cst_27 [0] : vector<32x128xf32> to vector<128xf32>
    %36 = vector.shape_cast %35 : vector<128xf32> to vector<1x128xf32>
    %c8_i32 = arith.constant 8 : i32
    %37 = tpu.dynamic_rotate %36 by %c8_i32 dim 1 : vector<1x128xf32>, i32 -> vector<1x128xf32>
    %38 = arith.addf %36, %37 : vector<1x128xf32>
    %c16_i32 = arith.constant 16 : i32
    %39 = tpu.dynamic_rotate %38 by %c16_i32 dim 1 : vector<1x128xf32>, i32 -> vector<1x128xf32>
    %40 = arith.addf %38, %39 : vector<1x128xf32>
    %c32_i32 = arith.constant 32 : i32
    %41 = tpu.dynamic_rotate %40 by %c32_i32 dim 1 : vector<1x128xf32>, i32 -> vector<1x128xf32>
    %42 = arith.addf %40, %41 : vector<1x128xf32>
    %c64_i32 = arith.constant 64 : i32
    %43 = tpu.dynamic_rotate %42 by %c64_i32 dim 1 : vector<1x128xf32>, i32 -> vector<1x128xf32>
    %44 = arith.addf %42, %43 : vector<1x128xf32>
    %cst_28 = arith.constant 0.001953125 : f32
    %45 = vector.broadcast %cst_28 : f32 to vector<1x128xf32>
    %46 = arith.mulf %44, %45 : vector<1x128xf32>
    %47 = vector.broadcast %46 : vector<1x128xf32> to vector<32x128xf32>
    %48 = arith.subf %32, %47 : vector<32x128xf32>
    %49 = arith.mulf %48, %48 : vector<32x128xf32>
    %cst_29 = arith.constant dense<0.000000e+00> : vector<128xf32>
    %50 = vector.multi_reduction <add>, %49, %cst_29 [0] : vector<32x128xf32> to vector<128xf32>
    %51 = vector.shape_cast %50 : vector<128xf32> to vector<1x128xf32>
    %c8_i32_30 = arith.constant 8 : i32
    %52 = tpu.dynamic_rotate %51 by %c8_i32_30 dim 1 : vector<1x128xf32>, i32 -> vector<1x128xf32>
    %53 = arith.addf %51, %52 : vector<1x128xf32>
    %c16_i32_31 = arith.constant 16 : i32
    %54 = tpu.dynamic_rotate %53 by %c16_i32_31 dim 1 : vector<1x128xf32>, i32 -> vector<1x128xf32>
    %55 = arith.addf %53, %54 : vector<1x128xf32>
    %c32_i32_32 = arith.constant 32 : i32
    %56 = tpu.dynamic_rotate %55 by %c32_i32_32 dim 1 : vector<1x128xf32>, i32 -> vector<1x128xf32>
    %57 = arith.addf %55, %56 : vector<1x128xf32>
    %c64_i32_33 = arith.constant 64 : i32
    %58 = tpu.dynamic_rotate %57 by %c64_i32_33 dim 1 : vector<1x128xf32>, i32 -> vector<1x128xf32>
    %59 = arith.addf %57, %58 : vector<1x128xf32>
    %cst_34 = arith.constant 0.001953125 : f32
    %60 = vector.broadcast %cst_34 : f32 to vector<1x128xf32>
    %61 = arith.mulf %59, %60 : vector<1x128xf32>
    %cst_35 = arith.constant 9.99999974E-6 : f32
    %62 = vector.broadcast %cst_35 : f32 to vector<1x128xf32>
    %63 = arith.addf %61, %62 : vector<1x128xf32>
    %64 = math.sqrt %63 : vector<1x128xf32>
    %65 = arith.divf %33, %64 : vector<1x128xf32>
    %66 = vector.broadcast %65 : vector<1x128xf32> to vector<32x128xf32>
    %67 = arith.mulf %48, %66 : vector<32x128xf32>
    %68 = vector.broadcast %34 : vector<1x128xf32> to vector<32x128xf32>
    %69 = arith.addf %67, %68 : vector<32x128xf32>
    %cst_36 = arith.constant 0.000000e+00 : f32
    %70 = vector.broadcast %cst_36 : f32 to vector<32x128xf32>
    %71 = arith.maximumf %69, %70 : vector<32x128xf32>
    %cst_37 = arith.constant 0.000000e+00 : f32
    %72 = vector.broadcast %cst_37 : f32 to vector<1x128xf32>
    %c0_38 = arith.constant 0 : index
    %c0_39 = arith.constant 0 : index
    %73 = vector.load %arg10[%c0_38, %c0_39] : memref<34x128xf32, #tpu.memory_space<vmem>>, vector<1x128xf32>
    tpu.vector_store %arg10[%c0_38, %c0_39], %72 {strides = array<i32>} : memref<34x128xf32, #tpu.memory_space<vmem>>, vector<1x128xf32>,
    %c1_40 = arith.constant 1 : index
    %c0_41 = arith.constant 0 : index
    %74 = vector.load %arg10[%c1_40, %c0_41] : memref<34x128xf32, #tpu.memory_space<vmem>>, vector<32x128xf32>
    tpu.vector_store %arg10[%c1_40, %c0_41], %71 {strides = array<i32>} : memref<34x128xf32, #tpu.memory_space<vmem>>, vector<32x128xf32>,
    %c33_42 = arith.constant 33 : index
    %c0_43 = arith.constant 0 : index
    %75 = vector.load %arg10[%c33_42, %c0_43] : memref<34x128xf32, #tpu.memory_space<vmem>>, vector<1x128xf32>
    tpu.vector_store %arg10[%c33_42, %c0_43], %72 {strides = array<i32>} : memref<34x128xf32, #tpu.memory_space<vmem>>, vector<1x128xf32>,
    %c0_44 = arith.constant 0 : index
    %c0_45 = arith.constant 0 : index
    %76 = vector.load %arg10[%c0_44, %c0_45] : memref<34x128xf32, #tpu.memory_space<vmem>>, vector<32x128xf32>
    %cst_46 = arith.constant 0.000000e+00 : f32
    %77 = vector.shape_cast %4 : vector<32x1xi1> to vector<32x1xi1>
    %78 = vector.broadcast %77 : vector<32x1xi1> to vector<32x128xi1>
    %79 = vector.broadcast %cst_46 : f32 to vector<32x128xf32>
    %80 = arith.select %78, %76, %79 : vector<32x128xi1>, vector<32x128xf32>
    %c2_47 = arith.constant 2 : index
    %c0_48 = arith.constant 0 : index
    %81 = vector.load %arg10[%c2_47, %c0_48] : memref<34x128xf32, #tpu.memory_space<vmem>>, vector<32x128xf32>
    %cst_49 = arith.constant 0.000000e+00 : f32
    %82 = vector.shape_cast %6 : vector<32x1xi1> to vector<32x1xi1>
    %83 = vector.broadcast %82 : vector<32x1xi1> to vector<32x128xi1>
    %84 = vector.broadcast %cst_49 : f32 to vector<32x128xf32>
    %85 = arith.select %83, %81, %84 : vector<32x128xi1>, vector<32x128xf32>
    %c0_50 = arith.constant 0 : index
    %c0_51 = arith.constant 0 : index
    %c0_52 = arith.constant 0 : index
    %86 = vector.load %arg3[%c0_50, %c0_51, %c0_52] : memref<3x128x128xf32, #tpu.memory_space<vmem>>, vector<1x128x128xf32>
    %87 = vector.shape_cast %86 : vector<1x128x128xf32> to vector<128x128xf32>
    %cst_53 = arith.constant dense<0.000000e+00> : vector<32x128xf32>
    %88 = tpu.matmul %80, %87, %cst_53 {dimension_numbers = #tpu.dot_dimension_numbers<[1], [0], [0], [1], [0, 0, 1, 1], [], []>} : vector<32x128xf32>, vector<128x128xf32>, vector<32x128xf32> -> vector<32x128xf32>
    %c1_54 = arith.constant 1 : index
    %c0_55 = arith.constant 0 : index
    %c0_56 = arith.constant 0 : index
    %89 = vector.load %arg3[%c1_54, %c0_55, %c0_56] : memref<3x128x128xf32, #tpu.memory_space<vmem>>, vector<1x128x128xf32>
    %90 = vector.shape_cast %89 : vector<1x128x128xf32> to vector<128x128xf32>
    %cst_57 = arith.constant dense<0.000000e+00> : vector<32x128xf32>
    %91 = tpu.matmul %71, %90, %cst_57 {dimension_numbers = #tpu.dot_dimension_numbers<[1], [0], [0], [1], [0, 0, 1, 1], [], []>} : vector<32x128xf32>, vector<128x128xf32>, vector<32x128xf32> -> vector<32x128xf32>
    %92 = arith.addf %88, %91 : vector<32x128xf32>
    %c2_58 = arith.constant 2 : index
    %c0_59 = arith.constant 0 : index
    %c0_60 = arith.constant 0 : index
    %93 = vector.load %arg3[%c2_58, %c0_59, %c0_60] : memref<3x128x128xf32, #tpu.memory_space<vmem>>, vector<1x128x128xf32>
    %94 = vector.shape_cast %93 : vector<1x128x128xf32> to vector<128x128xf32>
    %cst_61 = arith.constant dense<0.000000e+00> : vector<32x128xf32>
    %95 = tpu.matmul %85, %94, %cst_61 {dimension_numbers = #tpu.dot_dimension_numbers<[1], [0], [0], [1], [0, 0, 1, 1], [], []>} : vector<32x128xf32>, vector<128x128xf32>, vector<32x128xf32> -> vector<32x128xf32>
    %96 = arith.addf %92, %95 : vector<32x128xf32>
    %c0_62 = arith.constant 0 : index
    %c0_63 = arith.constant 0 : index
    %97 = vector.load %arg6[%c0_62, %c0_63] : memref<1x128xf32, #tpu.memory_space<vmem>>, vector<1x128xf32>
    %c0_64 = arith.constant 0 : index
    %c0_65 = arith.constant 0 : index
    %98 = vector.load %arg7[%c0_64, %c0_65] : memref<1x128xf32, #tpu.memory_space<vmem>>, vector<1x128xf32>
    %cst_66 = arith.constant dense<0.000000e+00> : vector<128xf32>
    %99 = vector.multi_reduction <add>, %96, %cst_66 [0] : vector<32x128xf32> to vector<128xf32>
    %100 = vector.shape_cast %99 : vector<128xf32> to vector<1x128xf32>
    %c8_i32_67 = arith.constant 8 : i32
    %101 = tpu.dynamic_rotate %100 by %c8_i32_67 dim 1 : vector<1x128xf32>, i32 -> vector<1x128xf32>
    %102 = arith.addf %100, %101 : vector<1x128xf32>
    %c16_i32_68 = arith.constant 16 : i32
    %103 = tpu.dynamic_rotate %102 by %c16_i32_68 dim 1 : vector<1x128xf32>, i32 -> vector<1x128xf32>
    %104 = arith.addf %102, %103 : vector<1x128xf32>
    %c32_i32_69 = arith.constant 32 : i32
    %105 = tpu.dynamic_rotate %104 by %c32_i32_69 dim 1 : vector<1x128xf32>, i32 -> vector<1x128xf32>
    %106 = arith.addf %104, %105 : vector<1x128xf32>
    %c64_i32_70 = arith.constant 64 : i32
    %107 = tpu.dynamic_rotate %106 by %c64_i32_70 dim 1 : vector<1x128xf32>, i32 -> vector<1x128xf32>
    %108 = arith.addf %106, %107 : vector<1x128xf32>
    %cst_71 = arith.constant 0.001953125 : f32
    %109 = vector.broadcast %cst_71 : f32 to vector<1x128xf32>
    %110 = arith.mulf %108, %109 : vector<1x128xf32>
    %111 = vector.broadcast %110 : vector<1x128xf32> to vector<32x128xf32>
    %112 = arith.subf %96, %111 : vector<32x128xf32>
    %113 = arith.mulf %112, %112 : vector<32x128xf32>
    %cst_72 = arith.constant dense<0.000000e+00> : vector<128xf32>
    %114 = vector.multi_reduction <add>, %113, %cst_72 [0] : vector<32x128xf32> to vector<128xf32>
    %115 = vector.shape_cast %114 : vector<128xf32> to vector<1x128xf32>
    %c8_i32_73 = arith.constant 8 : i32
    %116 = tpu.dynamic_rotate %115 by %c8_i32_73 dim 1 : vector<1x128xf32>, i32 -> vector<1x128xf32>
    %117 = arith.addf %115, %116 : vector<1x128xf32>
    %c16_i32_74 = arith.constant 16 : i32
    %118 = tpu.dynamic_rotate %117 by %c16_i32_74 dim 1 : vector<1x128xf32>, i32 -> vector<1x128xf32>
    %119 = arith.addf %117, %118 : vector<1x128xf32>
    %c32_i32_75 = arith.constant 32 : i32
    %120 = tpu.dynamic_rotate %119 by %c32_i32_75 dim 1 : vector<1x128xf32>, i32 -> vector<1x128xf32>
    %121 = arith.addf %119, %120 : vector<1x128xf32>
    %c64_i32_76 = arith.constant 64 : i32
    %122 = tpu.dynamic_rotate %121 by %c64_i32_76 dim 1 : vector<1x128xf32>, i32 -> vector<1x128xf32>
    %123 = arith.addf %121, %122 : vector<1x128xf32>
    %cst_77 = arith.constant 0.001953125 : f32
    %124 = vector.broadcast %cst_77 : f32 to vector<1x128xf32>
    %125 = arith.mulf %123, %124 : vector<1x128xf32>
    %cst_78 = arith.constant 9.99999974E-6 : f32
    %126 = vector.broadcast %cst_78 : f32 to vector<1x128xf32>
    %127 = arith.addf %125, %126 : vector<1x128xf32>
    %128 = math.sqrt %127 : vector<1x128xf32>
    %129 = arith.divf %97, %128 : vector<1x128xf32>
    %130 = vector.broadcast %129 : vector<1x128xf32> to vector<32x128xf32>
    %131 = arith.mulf %112, %130 : vector<32x128xf32>
    %132 = vector.broadcast %98 : vector<1x128xf32> to vector<32x128xf32>
    %133 = arith.addf %131, %132 : vector<32x128xf32>
    %cst_79 = arith.constant 0.000000e+00 : f32
    %134 = vector.broadcast %cst_79 : f32 to vector<32x128xf32>
    %135 = arith.maximumf %133, %134 : vector<32x128xf32>
    %c0_80 = arith.constant 0 : index
    %c0_81 = arith.constant 0 : index
    %136 = vector.load %arg8[%c0_80, %c0_81] : memref<32x128xf32, #tpu.memory_space<vmem>>, vector<32x128xf32>
    tpu.vector_store %arg8[%c0_80, %c0_81], %135 {strides = array<i32>} : memref<32x128xf32, #tpu.memory_space<vmem>>, vector<32x128xf32>,
    return
  }
  func.func @transform_0(%arg0: i32) -> (i32, i32) {
    %c0_i32 = arith.constant 0 : i32
    %c0_i32_0 = arith.constant 0 : i32
    %c0_i32_1 = arith.constant 0 : i32
    return %c0_i32, %c0_i32_0 : i32, i32
  }
  func.func @transform_1(%arg0: i32) -> (i32, i32, i32) {
    %c0_i32 = arith.constant 0 : i32
    %c0_i32_0 = arith.constant 0 : i32
    %c0_i32_1 = arith.constant 0 : i32
    %c0_i32_2 = arith.constant 0 : i32
    return %c0_i32, %c0_i32_0, %c0_i32_1 : i32, i32, i32
  }
  func.func @transform_2(%arg0: i32) -> (i32, i32, i32) {
    %c0_i32 = arith.constant 0 : i32
    %c0_i32_0 = arith.constant 0 : i32
    %c0_i32_1 = arith.constant 0 : i32
    %c0_i32_2 = arith.constant 0 : i32
    return %c0_i32, %c0_i32_0, %c0_i32_1 : i32, i32, i32
  }
  func.func @transform_3(%arg0: i32) -> (i32, i32) {
    %c0_i32 = arith.constant 0 : i32
    %c0_i32_0 = arith.constant 0 : i32
    %c0_i32_1 = arith.constant 0 : i32
    return %c0_i32, %c0_i32_0 : i32, i32
  }
  func.func @transform_4(%arg0: i32) -> (i32, i32) {
    %c0_i32 = arith.constant 0 : i32
    %c0_i32_0 = arith.constant 0 : i32
    %c0_i32_1 = arith.constant 0 : i32
    return %c0_i32, %c0_i32_0 : i32, i32
  }
  func.func @transform_5(%arg0: i32) -> (i32, i32) {
    %c0_i32 = arith.constant 0 : i32
    %c0_i32_0 = arith.constant 0 : i32
    %c0_i32_1 = arith.constant 0 : i32
    return %c0_i32, %c0_i32_0 : i32, i32
  }
  func.func @transform_6(%arg0: i32) -> (i32, i32) {
    %c0_i32 = arith.constant 0 : i32
    %c0_i32_0 = arith.constant 0 : i32
    %c0_i32_1 = arith.constant 0 : i32
    return %c0_i32, %c0_i32_0 : i32, i32
  }
  func.func @transform_7(%arg0: i32) -> (i32, i32) {
    %c0_i32 = arith.constant 0 : i32
    %c0_i32_0 = arith.constant 0 : i32
    %c0_i32_1 = arith.constant 0 : i32
    return %c0_i32, %c0_i32_0 : i32, i32
  }
}

</mosaic_0001>

<llo_original>
// kernel: double_conv.1
$region0: #{double_conv.1}
  #allocation0 [shape = 'u32[]', space=smem, size = 0x4, offset = 0x4, fixed_abs, tag = 'smem constant byte address 0x4 - core index']
  #allocation1 [shape = 'u32[144,128]{1,0:T(1,128)}', space=vmem, size = 0x12000, scoped, tag = 'internal scratch']
  #allocation2 [shape = 'f32[34,64]{1,0:T(8,128)}', space=vmem, size = 0x5000, scoped, tag = 'scratch operand']
  #allocation3 [shape = 'f32[34,128]{1,0:T(8,128)}', space=vmem, size = 0x5000, scoped, tag = 'scratch operand']
  %s0 = inlined_call_operand.vmem [shape: f32[32,64], index: 0, kind: input, shape index: {}]
  %s1 = inlined_call_operand.hbm [shape: f32[3,64,128], index: 1, kind: input, shape index: {}]
  %s2 = inlined_call_operand.vmem [shape: f32[3,128,128], index: 2, kind: input, shape index: {}]
  %s3 = inlined_call_operand.vmem [shape: f32[1,128], index: 3, kind: input, shape index: {}]
  %s4 = inlined_call_operand.vmem [shape: f32[1,128], index: 4, kind: input, shape index: {}]
  %s5 = inlined_call_operand.vmem [shape: f32[1,128], index: 5, kind: input, shape index: {}]
  %s6 = inlined_call_operand.vmem [shape: f32[1,128], index: 6, kind: input, shape index: {}]
  %s7 = inlined_call_operand.vmem [shape: f32[32,128], index: 7, kind: output, shape index: {}]
  %s8 = sld [smem:[#allocation0]]
  $region42: #{double_conv.1} parent=0
    _
  %s10 = ssub.s32 1, %s8
  %s11 = scalar_select 0, %s10, %s8
  $region1: #{double_conv.1} parent=0
    #allocation4 [shape = 'u8[98304]{0}', space=vmem, size = 0x18000, scoped, tag = 'input window, operand 1, single buffered']
    #allocation5 [shape = 's32[1]{0}', space=sflag, size = 0x4, scoped, tag = 'scoped memory for double_conv.1']
    %12 = vsyncpa [#allocation5], 0
    // Predicated region
    $region2: #{double_conv.1} parent=1 // pred_check
      _
    $region3: #{double_conv.1} parent=1 // pred_check_branch
      %14 = sbr.rel (0) target = $region5
    $region4: #{double_conv.1} parent=1 // pred_region
      _
    $region5: #{double_conv.1} parent=1 // pred_fallthru
      _
    // Predicated region
    $region6: #{double_conv.1} parent=1 // pred_check
      _
    $region7: #{double_conv.1} parent=1 // pred_check_branch
      %16 = sbr.rel (0) target = $region9
    $region8: #{double_conv.1} parent=1 // pred_region
      %s18 = ssub.s32 3072, 3072
      %19 = vsyncadd [#allocation5], %s18
      %s20 = sshll.u32 [#allocation4], 4
      %s21 = int_to_ptr.vmem [resolvable:$true] %s20
      %26 = dma.hbm_to_vmem [thread:$0]  %s1, 3072, %s21, [#allocation5], 128, 128, 8
    $region9: #{double_conv.1} parent=1 // pred_fallthru
      _
    // Predicated region
    $region10: #{double_conv.1} parent=1 // pred_check
      _
    $region11: #{double_conv.1} parent=1 // pred_check_branch
      %28 = sbr.rel (0) target = $region13
    $region12: #{double_conv.1} parent=1 // pred_region
      _
    $region13: #{double_conv.1} parent=1 // pred_fallthru
      _
    // Predicated region
    $region14: #{double_conv.1} parent=1 // pred_check
      _
    $region15: #{double_conv.1} parent=1 // pred_check_branch
      %30 = sbr.rel (0) target = $region17
    $region16: #{double_conv.1} parent=1 // pred_region
      _
    $region17: #{double_conv.1} parent=1 // pred_fallthru
      _
    // Predicated region
    $region18: #{double_conv.1} parent=1 // pred_check
      _
    $region19: #{double_conv.1} parent=1 // pred_check_branch
      %32 = sbr.rel (0) target = $region21
    $region20: #{double_conv.1} parent=1 // pred_region
      _
    $region21: #{double_conv.1} parent=1 // pred_fallthru
      _
    // Predicated region
    $region22: #{double_conv.1} parent=1 // pred_check
      _
    $region23: #{double_conv.1} parent=1 // pred_check_branch
      %34 = sbr.rel (0) target = $region25
    $region24: #{double_conv.1} parent=1 // pred_region
      _
    $region25: #{double_conv.1} parent=1 // pred_fallthru
      _
    // Predicated region
    $region26: #{double_conv.1} parent=1 // pred_check
      _
    $region27: #{double_conv.1} parent=1 // pred_check_branch
      %36 = sbr.rel (0) target = $region29
    $region28: #{double_conv.1} parent=1 // pred_region
      _
    $region29: #{double_conv.1} parent=1 // pred_fallthru
      _
    // Predicated region
    $region30: #{double_conv.1} parent=1 // pred_check
      _
    $region31: #{double_conv.1} parent=1 // pred_check_branch
      %38 = sbr.rel (0) target = $region33
    $region32: #{double_conv.1} parent=1 // pred_region
      %39 = dma.done [#allocation5], 3072
    $region33: #{double_conv.1} parent=1 // pred_fallthru
      _
    %v40 = vlaneseq
    %v41 = vshrl.u32 %v40, 7
    %v42 = vadd.s32 %v41, 8
    %v43 = vadd.s32 %v41, 16
    %v44 = vadd.s32 %v41, 24
    %v45 = vand.u32 %v41, 15
    %v46 = vand.u32 %v42, 15
    %v47 = vand.u32 %v43, 15
    %v48 = vand.u32 %v44, 15
    %vm49 = vcmp.ne.s32.totalorder %v45, 0
    %vm50 = vcmp.ne.s32.totalorder %v46, 0
    %vm51 = vcmp.ne.s32.totalorder %v47, 0
    %vm52 = vcmp.ne.s32.totalorder %v48, 0
    %vm53 = vcmp.ne.s32.totalorder %v45, 15
    %vm54 = vcmp.ne.s32.totalorder %v46, 15
    %vm55 = vcmp.ne.s32.totalorder %v47, 15
    %vm56 = vcmp.ne.s32.totalorder %v48, 15
    %v57 = vld [vmem:[%s0] sm:$0xff]
    %v58 = vld [vmem:[%s0 + $0x8] sm:$0xff]
    %v59 = vld [vmem:[%s0 + $0x10] sm:$0xff]
    %v60 = vld [vmem:[%s0 + $0x18] sm:$0xff]
    %vm61 = vcmask 516096
    %62 = vst.msk [vmem:[#allocation2] sm:$0x1] %vm61, 0.0
    %vm63 = vcmask 523264
    %64 = vst.msk [vmem:[#allocation2 + $0x1] sm:$0xff] %vm63, %v57
    %65 = vst.msk [vmem:[#allocation2 + $0x9] sm:$0xff] %vm63, %v58
    %66 = vst.msk [vmem:[#allocation2 + $0x11] sm:$0xff] %vm63, %v59
    %67 = vst.msk [vmem:[#allocation2 + $0x19] sm:$0xff] %vm63, %v60
    %68 = vst.msk [vmem:[#allocation2 + $0x21] sm:$0x1] %vm61, 0.0
    %v69 = vld [vmem:[#allocation2] sm:$0xff]
    %v70 = vld [vmem:[#allocation2 + $0x8] sm:$0xff]
    %v71 = vld [vmem:[#allocation2 + $0x10] sm:$0xff]
    %v72 = vld [vmem:[#allocation2 + $0x18] sm:$0xff]
    %v73 = vsel %vm49, 1, 0
    %v74 = vsel %vm50, 1, 0
    %v75 = vsel %vm51, 1, 0
    %v76 = vsel %vm52, 1, 0
    %vm77 = vcmp.eq.s32.totalorder %v73, 1
    %vm78 = vcmp.eq.s32.totalorder %v74, 1
    %vm79 = vcmp.eq.s32.totalorder %v75, 1
    %vm80 = vcmp.eq.s32.totalorder %v76, 1
    %v81 = vsel %vm77, %v69, 0.0
    %v82 = vsel %vm78, %v70, 0.0
    %v83 = vsel %vm79, %v71, 0.0
    %v84 = vsel %vm80, %v72, 0.0
    %v85 = vld [vmem:[#allocation2 + $0x2] sm:$0xff]
    %v86 = vld [vmem:[#allocation2 + $0xa] sm:$0xff]
    %v87 = vld [vmem:[#allocation2 + $0x12] sm:$0xff]
    %v88 = vld [vmem:[#allocation2 + $0x1a] sm:$0xff]
    %v89 = vsel %vm53, 1, 0
    %v90 = vsel %vm54, 1, 0
    %v91 = vsel %vm55, 1, 0
    %v92 = vsel %vm56, 1, 0
    %vm93 = vcmp.eq.s32.totalorder %v89, 1
    %vm94 = vcmp.eq.s32.totalorder %v90, 1
    %vm95 = vcmp.eq.s32.totalorder %v91, 1
    %vm96 = vcmp.eq.s32.totalorder %v92, 1
    %v97 = vsel %vm93, %v85, 0.0
    %v98 = vsel %vm94, %v86, 0.0
    %v99 = vsel %vm95, %v87, 0.0
    %v100 = vsel %vm96, %v88, 0.0
    %v101 = vld [vmem:[#allocation4] sm:$0xff]
    %v102 = vld [vmem:[#allocation4 + $0x8] sm:$0xff]
    %v103 = vld [vmem:[#allocation4 + $0x10] sm:$0xff]
    %v104 = vld [vmem:[#allocation4 + $0x18] sm:$0xff]
    %v105 = vld [vmem:[#allocation4 + $0x20] sm:$0xff]
    %v106 = vld [vmem:[#allocation4 + $0x28] sm:$0xff]
    %v107 = vld [vmem:[#allocation4 + $0x30] sm:$0xff]
    %v108 = vld [vmem:[#allocation4 + $0x38] sm:$0xff]
    %s109 = scalar_lea.vmem [#allocation4], 64
    %v110 = vld [vmem:[%s109] sm:$0xff]
    %v111 = vld [vmem:[%s109 + $0x8] sm:$0xff]
    %v112 = vld [vmem:[%s109 + $0x10] sm:$0xff]
    %v113 = vld [vmem:[%s109 + $0x18] sm:$0xff]
    %v114 = vld [vmem:[%s109 + $0x20] sm:$0xff]
    %v115 = vld [vmem:[%s109 + $0x28] sm:$0xff]
    %v116 = vld [vmem:[%s109 + $0x30] sm:$0xff]
    %v117 = vld [vmem:[%s109 + $0x38] sm:$0xff]
    %v119 = vsel %vm63, %v57, 0
    %v122 = vsel %vm63, %v58, 0
    %v125 = vsel %vm63, %v59, 0
    %v128 = vsel %vm63, %v60, 0
    %130 = vmatprep.subr.mxu0 0.0
    %131 = vmatpush1.msra.mxu0 %v110
    %132 = vmatprep.subr.mxu0 0.0
    %133 = vmatpush1.msra.mxu0 %v111
    %134 = vmatprep.subr.mxu0 0.0
    %135 = vmatpush1.msra.mxu0 %v112
    %136 = vmatprep.subr.mxu0 0.0
    %137 = vmatpush1.msra.mxu0 %v113
    %138 = vmatprep.subr.mxu0 0.0
    %139 = vmatpush1.msra.mxu0 %v114
    %140 = vmatprep.subr.mxu0 0.0
    %141 = vmatpush1.msra.mxu0 %v115
    %142 = vmatprep.subr.mxu0 0.0
    %143 = vmatpush1.msra.mxu0 %v116
    %144 = vmatprep.subr.mxu0 0.0
    %145 = vmatpush1.msra.mxu0 %v117
    %146 = vmatprep.subr.mxu0 0.0
    %147 = vmatpush1.msra.mxu0 0.0
    %148 = vmatprep.subr.mxu0 0.0
    %149 = vmatpush1.msra.mxu0 0.0
    %150 = vmatprep.subr.mxu0 0.0
    %151 = vmatpush1.msra.mxu0 0.0
    %152 = vmatprep.subr.mxu0 0.0
    %153 = vmatpush1.msra.mxu0 0.0
    %154 = vmatprep.subr.mxu0 0.0
    %155 = vmatpush1.msra.mxu0 0.0
    %156 = vmatprep.subr.mxu0 0.0
    %157 = vmatpush1.msra.mxu0 0.0
    %158 = vmatprep.subr.mxu0 0.0
    %159 = vmatpush1.msra.mxu0 0.0
    %160 = vmatprep.subr.mxu0 0.0
    %161 = vmatpush1.msra.mxu0 0.0
    %162 = vmatprep.subr.mxu0 0.0
    %163 = vmatpush1.msra.mxu0 0.0
    %164 = vmatprep.subr.mxu0 0.0
    %165 = vmatpush1.msra.mxu0 0.0
    %166 = vmatprep.subr.mxu0 0.0
    %167 = vmatpush1.msra.mxu0 0.0
    %168 = vmatprep.subr.mxu0 0.0
    %169 = vmatpush1.msra.mxu0 0.0
    %170 = vmatprep.subr.mxu0 0.0
    %171 = vmatpush1.msra.mxu0 0.0
    %172 = vmatprep.subr.mxu0 0.0
    %173 = vmatpush1.msra.mxu0 0.0
    %174 = vmatprep.subr.mxu0 0.0
    %175 = vmatpush1.msra.mxu0 0.0
    %176 = vmatprep.subr.mxu0 0.0
    %177 = vmatpush1.msra.mxu0 0.0
    %178 = vmatprep.subr.mxu0 0.0
    %179 = vmatpush1.msra.mxu0 0.0
    %180 = vmatprep.subr.mxu0 0.0
    %181 = vmatpush1.msra.mxu0 0.0
    %182 = vmatprep.subr.mxu0 0.0
    %183 = vmatpush1.msra.mxu0 0.0
    %184 = vmatprep.subr.mxu0 0.0
    %185 = vmatpush1.msra.mxu0 0.0
    %186 = vmatprep.subr.mxu0 0.0
    %187 = vmatpush1.msra.mxu0 0.0
    %188 = vmatprep.subr.mxu0 0.0
    %189 = vmatpush1.msra.mxu0 0.0
    %190 = vmatprep.subr.mxu0 0.0
    %191 = vmatpush1.msra.mxu0 0.0
    %192 = vmatprep.subr.mxu0 0.0
    %193 = vmatpush1.msra.mxu0 0.0
    %194 = vmatprep.mubr.f32.mxu0 0.0
    %195 = vmatmul.mubr.f32.gmra.mrb[0].mxu0 %v119
    %v196 = vpop.f32.mrb[0].mxu0
    %v197 = vadd.f32 0.0, %v196
    %v198 = vpop.f32.mrb[0].mxu0
    %199 = vmatprep.mubr.f32.mxu0 0.0
    %200 = vmatmul.mubr.f32.gmra.mrb[0].mxu0 %v122
    %v201 = vpop.f32.mrb[0].mxu0
    %v202 = vadd.f32 0.0, %v201
    %v203 = vpop.f32.mrb[0].mxu0
    %204 = vmatprep.mubr.f32.mxu0 0.0
    %205 = vmatmul.mubr.f32.gmra.mrb[0].mxu0 %v125
    %v206 = vpop.f32.mrb[0].mxu0
    %v207 = vadd.f32 0.0, %v206
    %v208 = vpop.f32.mrb[0].mxu0
    %209 = vmatprep.mubr.f32.mxu0 0.0
    %210 = vmatmul.mubr.f32.gmra.mrb[0].mxu0 %v128
    %v211 = vpop.f32.mrb[0].mxu0
    %v212 = vadd.f32 0.0, %v211
    %v213 = vpop.f32.mrb[0].mxu0
    %214 = vdwg.mxu0
    %v216 = vsel %vm63, %v81, 0
    %v219 = vsel %vm63, %v82, 0
    %v222 = vsel %vm63, %v83, 0
    %v225 = vsel %vm63, %v84, 0
    %227 = vmatprep.subr.mxu0 0.0
    %228 = vmatpush1.msra.mxu0 %v101
    %229 = vmatprep.subr.mxu0 0.0
    %230 = vmatpush1.msra.mxu0 %v102
    %231 = vmatprep.subr.mxu0 0.0
    %232 = vmatpush1.msra.mxu0 %v103
    %233 = vmatprep.subr.mxu0 0.0
    %234 = vmatpush1.msra.mxu0 %v104
    %235 = vmatprep.subr.mxu0 0.0
    %236 = vmatpush1.msra.mxu0 %v105
    %237 = vmatprep.subr.mxu0 0.0
    %238 = vmatpush1.msra.mxu0 %v106
    %239 = vmatprep.subr.mxu0 0.0
    %240 = vmatpush1.msra.mxu0 %v107
    %241 = vmatprep.subr.mxu0 0.0
    %242 = vmatpush1.msra.mxu0 %v108
    %243 = vmatprep.subr.mxu0 0.0
    %244 = vmatpush1.msra.mxu0 0.0
    %245 = vmatprep.subr.mxu0 0.0
    %246 = vmatpush1.msra.mxu0 0.0
    %247 = vmatprep.subr.mxu0 0.0
    %248 = vmatpush1.msra.mxu0 0.0
    %249 = vmatprep.subr.mxu0 0.0
    %250 = vmatpush1.msra.mxu0 0.0
    %251 = vmatprep.subr.mxu0 0.0
    %252 = vmatpush1.msra.mxu0 0.0
    %253 = vmatprep.subr.mxu0 0.0
    %254 = vmatpush1.msra.mxu0 0.0
    %255 = vmatprep.subr.mxu0 0.0
    %256 = vmatpush1.msra.mxu0 0.0
    %257 = vmatprep.subr.mxu0 0.0
    %258 = vmatpush1.msra.mxu0 0.0
    %259 = vmatprep.subr.mxu0 0.0
    %260 = vmatpush1.msra.mxu0 0.0
    %261 = vmatprep.subr.mxu0 0.0
    %262 = vmatpush1.msra.mxu0 0.0
    %263 = vmatprep.subr.mxu0 0.0
    %264 = vmatpush1.msra.mxu0 0.0
    %265 = vmatprep.subr.mxu0 0.0
    %266 = vmatpush1.msra.mxu0 0.0
    %267 = vmatprep.subr.mxu0 0.0
    %268 = vmatpush1.msra.mxu0 0.0
    %269 = vmatprep.subr.mxu0 0.0
    %270 = vmatpush1.msra.mxu0 0.0
    %271 = vmatprep.subr.mxu0 0.0
    %272 = vmatpush1.msra.mxu0 0.0
    %273 = vmatprep.subr.mxu0 0.0
    %274 = vmatpush1.msra.mxu0 0.0
    %275 = vmatprep.subr.mxu0 0.0
    %276 = vmatpush1.msra.mxu0 0.0
    %277 = vmatprep.subr.mxu0 0.0
    %278 = vmatpush1.msra.mxu0 0.0
    %279 = vmatprep.subr.mxu0 0.0
    %280 = vmatpush1.msra.mxu0 0.0
    %281 = vmatprep.subr.mxu0 0.0
    %282 = vmatpush1.msra.mxu0 0.0
    %283 = vmatprep.subr.mxu0 0.0
    %284 = vmatpush1.msra.mxu0 0.0
    %285 = vmatprep.subr.mxu0 0.0
    %286 = vmatpush1.msra.mxu0 0.0
    %287 = vmatprep.subr.mxu0 0.0
    %288 = vmatpush1.msra.mxu0 0.0
    %289 = vmatprep.subr.mxu0 0.0
    %290 = vmatpush1.msra.mxu0 0.0
    %291 = vmatprep.mubr.f32.mxu0 0.0
    %292 = vmatmul.mubr.f32.gmra.mrb[0].mxu0 %v216
    %v293 = vpop.f32.mrb[0].mxu0
    %v294 = vadd.f32 %v197, %v293
    %v295 = vpop.f32.mrb[0].mxu0
    %296 = vmatprep.mubr.f32.mxu0 0.0
    %297 = vmatmul.mubr.f32.gmra.mrb[0].mxu0 %v219
    %v298 = vpop.f32.mrb[0].mxu0
    %v299 = vadd.f32 %v202, %v298
    %v300 = vpop.f32.mrb[0].mxu0
    %301 = vmatprep.mubr.f32.mxu0 0.0
    %302 = vmatmul.mubr.f32.gmra.mrb[0].mxu0 %v222
    %v303 = vpop.f32.mrb[0].mxu0
    %v304 = vadd.f32 %v207, %v303
    %v305 = vpop.f32.mrb[0].mxu0
    %306 = vmatprep.mubr.f32.mxu0 0.0
    %307 = vmatmul.mubr.f32.gmra.mrb[0].mxu0 %v225
    %v308 = vpop.f32.mrb[0].mxu0
    %v309 = vadd.f32 %v212, %v308
    %v310 = vpop.f32.mrb[0].mxu0
    %311 = vdwg.mxu0
    %s312 = scalar_lea.vmem [#allocation4], 128
    %v313 = vld [vmem:[%s312] sm:$0xff]
    %v314 = vld [vmem:[%s312 + $0x8] sm:$0xff]
    %v315 = vld [vmem:[%s312 + $0x10] sm:$0xff]
    %v316 = vld [vmem:[%s312 + $0x18] sm:$0xff]
    %v317 = vld [vmem:[%s312 + $0x20] sm:$0xff]
    %v318 = vld [vmem:[%s312 + $0x28] sm:$0xff]
    %v319 = vld [vmem:[%s312 + $0x30] sm:$0xff]
    %v320 = vld [vmem:[%s312 + $0x38] sm:$0xff]
    %v322 = vsel %vm63, %v97, 0
    %v325 = vsel %vm63, %v98, 0
    %v328 = vsel %vm63, %v99, 0
    %v331 = vsel %vm63, %v100, 0
    %333 = vmatprep.subr.mxu0 0.0
    %334 = vmatpush1.msra.mxu0 %v313
    %335 = vmatprep.subr.mxu0 0.0
    %336 = vmatpush1.msra.mxu0 %v314
    %337 = vmatprep.subr.mxu0 0.0
    %338 = vmatpush1.msra.mxu0 %v315
    %339 = vmatprep.subr.mxu0 0.0
    %340 = vmatpush1.msra.mxu0 %v316
    %341 = vmatprep.subr.mxu0 0.0
    %342 = vmatpush1.msra.mxu0 %v317
    %343 = vmatprep.subr.mxu0 0.0
    %344 = vmatpush1.msra.mxu0 %v318
    %345 = vmatprep.subr.mxu0 0.0
    %346 = vmatpush1.msra.mxu0 %v319
    %347 = vmatprep.subr.mxu0 0.0
    %348 = vmatpush1.msra.mxu0 %v320
    %349 = vmatprep.subr.mxu0 0.0
    %350 = vmatpush1.msra.mxu0 0.0
    %351 = vmatprep.subr.mxu0 0.0
    %352 = vmatpush1.msra.mxu0 0.0
    %353 = vmatprep.subr.mxu0 0.0
    %354 = vmatpush1.msra.mxu0 0.0
    %355 = vmatprep.subr.mxu0 0.0
    %356 = vmatpush1.msra.mxu0 0.0
    %357 = vmatprep.subr.mxu0 0.0
    %358 = vmatpush1.msra.mxu0 0.0
    %359 = vmatprep.subr.mxu0 0.0
    %360 = vmatpush1.msra.mxu0 0.0
    %361 = vmatprep.subr.mxu0 0.0
    %362 = vmatpush1.msra.mxu0 0.0
    %363 = vmatprep.subr.mxu0 0.0
    %364 = vmatpush1.msra.mxu0 0.0
    %365 = vmatprep.subr.mxu0 0.0
    %366 = vmatpush1.msra.mxu0 0.0
    %367 = vmatprep.subr.mxu0 0.0
    %368 = vmatpush1.msra.mxu0 0.0
    %369 = vmatprep.subr.mxu0 0.0
    %370 = vmatpush1.msra.mxu0 0.0
    %371 = vmatprep.subr.mxu0 0.0
    %372 = vmatpush1.msra.mxu0 0.0
    %373 = vmatprep.subr.mxu0 0.0
    %374 = vmatpush1.msra.mxu0 0.0
    %375 = vmatprep.subr.mxu0 0.0
    %376 = vmatpush1.msra.mxu0 0.0
    %377 = vmatprep.subr.mxu0 0.0
    %378 = vmatpush1.msra.mxu0 0.0
    %379 = vmatprep.subr.mxu0 0.0
    %380 = vmatpush1.msra.mxu0 0.0
    %381 = vmatprep.subr.mxu0 0.0
    %382 = vmatpush1.msra.mxu0 0.0
    %383 = vmatprep.subr.mxu0 0.0
    %384 = vmatpush1.msra.mxu0 0.0
    %385 = vmatprep.subr.mxu0 0.0
    %386 = vmatpush1.msra.mxu0 0.0
    %387 = vmatprep.subr.mxu0 0.0
    %388 = vmatpush1.msra.mxu0 0.0
    %389 = vmatprep.subr.mxu0 0.0
    %390 = vmatpush1.msra.mxu0 0.0
    %391 = vmatprep.subr.mxu0 0.0
    %392 = vmatpush1.msra.mxu0 0.0
    %393 = vmatprep.subr.mxu0 0.0
    %394 = vmatpush1.msra.mxu0 0.0
    %395 = vmatprep.subr.mxu0 0.0
    %396 = vmatpush1.msra.mxu0 0.0
    %397 = vmatprep.mubr.f32.mxu0 0.0
    %398 = vmatmul.mubr.f32.gmra.mrb[0].mxu0 %v322
    %v399 = vpop.f32.mrb[0].mxu0
    %v400 = vadd.f32 0.0, %v399
    %v401 = vpop.f32.mrb[0].mxu0
    %402 = vmatprep.mubr.f32.mxu0 0.0
    %403 = vmatmul.mubr.f32.gmra.mrb[0].mxu0 %v325
    %v404 = vpop.f32.mrb[0].mxu0
    %v405 = vadd.f32 0.0, %v404
    %v406 = vpop.f32.mrb[0].mxu0
    %407 = vmatprep.mubr.f32.mxu0 0.0
    %408 = vmatmul.mubr.f32.gmra.mrb[0].mxu0 %v328
    %v409 = vpop.f32.mrb[0].mxu0
    %v410 = vadd.f32 0.0, %v409
    %v411 = vpop.f32.mrb[0].mxu0
    %412 = vmatprep.mubr.f32.mxu0 0.0
    %413 = vmatmul.mubr.f32.gmra.mrb[0].mxu0 %v331
    %v414 = vpop.f32.mrb[0].mxu0
    %v415 = vadd.f32 0.0, %v414
    %v416 = vpop.f32.mrb[0].mxu0
    %417 = vdwg.mxu0
    %v418 = vadd.f32 %v294, %v400
    %v419 = vadd.f32 %v299, %v405
    %v420 = vadd.f32 %v304, %v410
    %v421 = vadd.f32 %v309, %v415
    %v422 = vld [vmem:[%s3] sm:$0x1]
    %v423 = vld [vmem:[%s4] sm:$0x1]
    %v424 = vadd.f32 %v418, %v419
    %v425 = vadd.f32 %v424, %v420
    %v426 = vadd.f32 %v425, %v421
    %v427 = vrot.slane %v426, 4
    %v428 = vadd.f32 %v426, %v427
    %v429 = vrot.slane %v428, 2
    %v430 = vadd.f32 %v428, %v429
    %v431 = vrot.slane %v430, 1
    %v432 = vadd.f32 %v430, %v431
    %433 = vrot.lane.b32.xlu0 %v432, 8
    %v434 = vpop.permute.xlu0 %433
    %v435 = vadd.f32 %v432, %v434
    %436 = vrot.lane.b32.xlu0 %v435, 16
    %v437 = vpop.permute.xlu0 %436
    %v438 = vadd.f32 %v435, %v437
    %439 = vrot.lane.b32.xlu0 %v438, 32
    %v440 = vpop.permute.xlu0 %439
    %v441 = vadd.f32 %v438, %v440
    %442 = vrot.lane.b32.xlu0 %v441, 64
    %v443 = vpop.permute.xlu0 %442
    %v444 = vadd.f32 %v441, %v443
    %v445 = vmul.f32 %v444, 0.001953125
    %v446 = vlaneseq
    %v447 = vshrl.u32 %v446, 7
    %v448 = vsub.s32 0, %v447
    %v449 = vrot.slane %v445, %v448
    %v450 = vsub.f32 %v418, %v449
    %v451 = vsub.f32 %v419, %v449
    %v452 = vsub.f32 %v420, %v449
    %v453 = vsub.f32 %v421, %v449
    %v454 = vmul.f32 %v450, %v450
    %v455 = vmul.f32 %v451, %v451
    %v456 = vmul.f32 %v452, %v452
    %v457 = vmul.f32 %v453, %v453
    %v458 = vadd.f32 %v454, %v455
    %v459 = vadd.f32 %v458, %v456
    %v460 = vadd.f32 %v459, %v457
    %v461 = vrot.slane %v460, 4
    %v462 = vadd.f32 %v460, %v461
    %v463 = vrot.slane %v462, 2
    %v464 = vadd.f32 %v462, %v463
    %v465 = vrot.slane %v464, 1
    %v466 = vadd.f32 %v464, %v465
    %467 = vrot.lane.b32.xlu0 %v466, 8
    %v468 = vpop.permute.xlu0 %467
    %v469 = vadd.f32 %v466, %v468
    %470 = vrot.lane.b32.xlu0 %v469, 16
    %v471 = vpop.permute.xlu0 %470
    %v472 = vadd.f32 %v469, %v471
    %473 = vrot.lane.b32.xlu0 %v472, 32
    %v474 = vpop.permute.xlu0 %473
    %v475 = vadd.f32 %v472, %v474
    %476 = vrot.lane.b32.xlu0 %v475, 64
    %v477 = vpop.permute.xlu0 %476
    %v478 = vadd.f32 %v475, %v477
    %v479 = vmul.f32 %v478, 0.001953125
    %v480 = vadd.f32 %v479, 1e-05
    %v481 = vrsqrt.pop %v480
    %v482 = vmul.f32 %v480, %v481
    %vm483 = vcmp.eq.f32.partialorder %v480, inf
    %v484 = vsel %vm483, %v480, %v482
    %vm485 = vcmp.eq.f32.partialorder %v480, 0.0
    %v486 = vand.u32 %v480, 2147483648
    %v487 = vsel %vm485, %v486, %v484
    %v488 = vrcp.pop %v487
    %v489 = vmul.f32 %v422, %v488
    %v491 = vlaneseq
    %v492 = vshrl.u32 %v491, 7
    %v493 = vsub.s32 0, %v492
    %v494 = vrot.slane %v489, %v493
    %v496 = vmul.f32 %v450, %v494
    %v497 = vmul.f32 %v451, %v494
    %v498 = vmul.f32 %v452, %v494
    %v499 = vmul.f32 %v453, %v494
    %v501 = vlaneseq
    %v502 = vshrl.u32 %v501, 7
    %v503 = vsub.s32 0, %v502
    %v504 = vrot.slane %v423, %v503
    %v506 = vadd.f32 %v496, %v504
    %v507 = vadd.f32 %v497, %v504
    %v508 = vadd.f32 %v498, %v504
    %v509 = vadd.f32 %v499, %v504
    %v510 = vmax.f32 %v506, 0.0
    %v511 = vmax.f32 %v507, 0.0
    %v512 = vmax.f32 %v508, 0.0
    %v513 = vmax.f32 %v509, 0.0
    %514 = vst [vmem:[#allocation3] sm:$0x1] 0.0
    %515 = vst [vmem:[#allocation3 + $0x1] sm:$0xff] %v510
    %516 = vst [vmem:[#allocation3 + $0x9] sm:$0xff] %v511
    %517 = vst [vmem:[#allocation3 + $0x11] sm:$0xff] %v512
    %518 = vst [vmem:[#allocation3 + $0x19] sm:$0xff] %v513
    %519 = vst [vmem:[#allocation3 + $0x21] sm:$0x1] 0.0
    %v520 = vld [vmem:[#allocation3] sm:$0xff]
    %v521 = vld [vmem:[#allocation3 + $0x8] sm:$0xff]
    %v522 = vld [vmem:[#allocation3 + $0x10] sm:$0xff]
    %v523 = vld [vmem:[#allocation3 + $0x18] sm:$0xff]
    %v524 = vsel %vm77, %v520, 0.0
    %v525 = vsel %vm78, %v521, 0.0
    %v526 = vsel %vm79, %v522, 0.0
    %v527 = vsel %vm80, %v523, 0.0
    %v528 = vld [vmem:[#allocation3 + $0x2] sm:$0xff]
    %v529 = vld [vmem:[#allocation3 + $0xa] sm:$0xff]
    %v530 = vld [vmem:[#allocation3 + $0x12] sm:$0xff]
    %v531 = vld [vmem:[#allocation3 + $0x1a] sm:$0xff]
    %v532 = vsel %vm93, %v528, 0.0
    %v533 = vsel %vm94, %v529, 0.0
    %v534 = vsel %vm95, %v530, 0.0
    %v535 = vsel %vm96, %v531, 0.0
    %v536 = vld [vmem:[%s2] sm:$0xff]
    %v537 = vld [vmem:[%s2 + $0x8] sm:$0xff]
    %v538 = vld [vmem:[%s2 + $0x10] sm:$0xff]
    %v539 = vld [vmem:[%s2 + $0x18] sm:$0xff]
    %v540 = vld [vmem:[%s2 + $0x20] sm:$0xff]
    %v541 = vld [vmem:[%s2 + $0x28] sm:$0xff]
    %v542 = vld [vmem:[%s2 + $0x30] sm:$0xff]
    %v543 = vld [vmem:[%s2 + $0x38] sm:$0xff]
    %v544 = vld [vmem:[%s2 + $0x40] sm:$0xff]
    %v545 = vld [vmem:[%s2 + $0x48] sm:$0xff]
    %v546 = vld [vmem:[%s2 + $0x50] sm:$0xff]
    %v547 = vld [vmem:[%s2 + $0x58] sm:$0xff]
    %v548 = vld [vmem:[%s2 + $0x60] sm:$0xff]
    %v549 = vld [vmem:[%s2 + $0x68] sm:$0xff]
    %v550 = vld [vmem:[%s2 + $0x70] sm:$0xff]
    %v551 = vld [vmem:[%s2 + $0x78] sm:$0xff]
    %s552 = scalar_lea.vmem %s2, 128
    %v553 = vld [vmem:[%s552] sm:$0xff]
    %v554 = vld [vmem:[%s552 + $0x8] sm:$0xff]
    %v555 = vld [vmem:[%s552 + $0x10] sm:$0xff]
    %v556 = vld [vmem:[%s552 + $0x18] sm:$0xff]
    %v557 = vld [vmem:[%s552 + $0x20] sm:$0xff]
    %v558 = vld [vmem:[%s552 + $0x28] sm:$0xff]
    %v559 = vld [vmem:[%s552 + $0x30] sm:$0xff]
    %v560 = vld [vmem:[%s552 + $0x38] sm:$0xff]
    %v561 = vld [vmem:[%s552 + $0x40] sm:$0xff]
    %v562 = vld [vmem:[%s552 + $0x48] sm:$0xff]
    %v563 = vld [vmem:[%s552 + $0x50] sm:$0xff]
    %v564 = vld [vmem:[%s552 + $0x58] sm:$0xff]
    %v565 = vld [vmem:[%s552 + $0x60] sm:$0xff]
    %v566 = vld [vmem:[%s552 + $0x68] sm:$0xff]
    %v567 = vld [vmem:[%s552 + $0x70] sm:$0xff]
    %v568 = vld [vmem:[%s552 + $0x78] sm:$0xff]
    %569 = vmatprep.subr.mxu0 0.0
    %570 = vmatpush1.msra.mxu0 %v553
    %571 = vmatprep.subr.mxu0 0.0
    %572 = vmatpush1.msra.mxu0 %v554
    %573 = vmatprep.subr.mxu0 0.0
    %574 = vmatpush1.msra.mxu0 %v555
    %575 = vmatprep.subr.mxu0 0.0
    %576 = vmatpush1.msra.mxu0 %v556
    %577 = vmatprep.subr.mxu0 0.0
    %578 = vmatpush1.msra.mxu0 %v557
    %579 = vmatprep.subr.mxu0 0.0
    %580 = vmatpush1.msra.mxu0 %v558
    %581 = vmatprep.subr.mxu0 0.0
    %582 = vmatpush1.msra.mxu0 %v559
    %583 = vmatprep.subr.mxu0 0.0
    %584 = vmatpush1.msra.mxu0 %v560
    %585 = vmatprep.subr.mxu0 0.0
    %586 = vmatpush1.msra.mxu0 %v561
    %587 = vmatprep.subr.mxu0 0.0
    %588 = vmatpush1.msra.mxu0 %v562
    %589 = vmatprep.subr.mxu0 0.0
    %590 = vmatpush1.msra.mxu0 %v563
    %591 = vmatprep.subr.mxu0 0.0
    %592 = vmatpush1.msra.mxu0 %v564
    %593 = vmatprep.subr.mxu0 0.0
    %594 = vmatpush1.msra.mxu0 %v565
    %595 = vmatprep.subr.mxu0 0.0
    %596 = vmatpush1.msra.mxu0 %v566
    %597 = vmatprep.subr.mxu0 0.0
    %598 = vmatpush1.msra.mxu0 %v567
    %599 = vmatprep.subr.mxu0 0.0
    %600 = vmatpush1.msra.mxu0 %v568
    %601 = vmatprep.subr.mxu0 0.0
    %602 = vmatpush1.msra.mxu0 0.0
    %603 = vmatprep.subr.mxu0 0.0
    %604 = vmatpush1.msra.mxu0 0.0
    %605 = vmatprep.subr.mxu0 0.0
    %606 = vmatpush1.msra.mxu0 0.0
    %607 = vmatprep.subr.mxu0 0.0
    %608 = vmatpush1.msra.mxu0 0.0
    %609 = vmatprep.subr.mxu0 0.0
    %610 = vmatpush1.msra.mxu0 0.0
    %611 = vmatprep.subr.mxu0 0.0
    %612 = vmatpush1.msra.mxu0 0.0
    %613 = vmatprep.subr.mxu0 0.0
    %614 = vmatpush1.msra.mxu0 0.0
    %615 = vmatprep.subr.mxu0 0.0
    %616 = vmatpush1.msra.mxu0 0.0
    %617 = vmatprep.subr.mxu0 0.0
    %618 = vmatpush1.msra.mxu0 0.0
    %619 = vmatprep.subr.mxu0 0.0
    %620 = vmatpush1.msra.mxu0 0.0
    %621 = vmatprep.subr.mxu0 0.0
    %622 = vmatpush1.msra.mxu0 0.0
    %623 = vmatprep.subr.mxu0 0.0
    %624 = vmatpush1.msra.mxu0 0.0
    %625 = vmatprep.subr.mxu0 0.0
    %626 = vmatpush1.msra.mxu0 0.0
    %627 = vmatprep.subr.mxu0 0.0
    %628 = vmatpush1.msra.mxu0 0.0
    %629 = vmatprep.subr.mxu0 0.0
    %630 = vmatpush1.msra.mxu0 0.0
    %631 = vmatprep.subr.mxu0 0.0
    %632 = vmatpush1.msra.mxu0 0.0
    %633 = vmatprep.mubr.f32.mxu0 0.0
    %634 = vmatmul.mubr.f32.gmra.mrb[0].mxu0 %v510
    %v635 = vpop.f32.mrb[0].mxu0
    %v636 = vadd.f32 0.0, %v635
    %v637 = vpop.f32.mrb[0].mxu0
    %638 = vmatprep.mubr.f32.mxu0 0.0
    %639 = vmatmul.mubr.f32.gmra.mrb[0].mxu0 %v511
    %v640 = vpop.f32.mrb[0].mxu0
    %v641 = vadd.f32 0.0, %v640
    %v642 = vpop.f32.mrb[0].mxu0
    %643 = vmatprep.mubr.f32.mxu0 0.0
    %644 = vmatmul.mubr.f32.gmra.mrb[0].mxu0 %v512
    %v645 = vpop.f32.mrb[0].mxu0
    %v646 = vadd.f32 0.0, %v645
    %v647 = vpop.f32.mrb[0].mxu0
    %648 = vmatprep.mubr.f32.mxu0 0.0
    %649 = vmatmul.mubr.f32.gmra.mrb[0].mxu0 %v513
    %v650 = vpop.f32.mrb[0].mxu0
    %v651 = vadd.f32 0.0, %v650
    %v652 = vpop.f32.mrb[0].mxu0
    %653 = vdwg.mxu0
    %654 = vmatprep.subr.mxu0 0.0
    %655 = vmatpush1.msra.mxu0 %v536
    %656 = vmatprep.subr.mxu0 0.0
    %657 = vmatpush1.msra.mxu0 %v537
    %658 = vmatprep.subr.mxu0 0.0
    %659 = vmatpush1.msra.mxu0 %v538
    %660 = vmatprep.subr.mxu0 0.0
    %661 = vmatpush1.msra.mxu0 %v539
    %662 = vmatprep.subr.mxu0 0.0
    %663 = vmatpush1.msra.mxu0 %v540
    %664 = vmatprep.subr.mxu0 0.0
    %665 = vmatpush1.msra.mxu0 %v541
    %666 = vmatprep.subr.mxu0 0.0
    %667 = vmatpush1.msra.mxu0 %v542
    %668 = vmatprep.subr.mxu0 0.0
    %669 = vmatpush1.msra.mxu0 %v543
    %670 = vmatprep.subr.mxu0 0.0
    %671 = vmatpush1.msra.mxu0 %v544
    %672 = vmatprep.subr.mxu0 0.0
    %673 = vmatpush1.msra.mxu0 %v545
    %674 = vmatprep.subr.mxu0 0.0
    %675 = vmatpush1.msra.mxu0 %v546
    %676 = vmatprep.subr.mxu0 0.0
    %677 = vmatpush1.msra.mxu0 %v547
    %678 = vmatprep.subr.mxu0 0.0
    %679 = vmatpush1.msra.mxu0 %v548
    %680 = vmatprep.subr.mxu0 0.0
    %681 = vmatpush1.msra.mxu0 %v549
    %682 = vmatprep.subr.mxu0 0.0
    %683 = vmatpush1.msra.mxu0 %v550
    %684 = vmatprep.subr.mxu0 0.0
    %685 = vmatpush1.msra.mxu0 %v551
    %686 = vmatprep.subr.mxu0 0.0
    %687 = vmatpush1.msra.mxu0 0.0
    %688 = vmatprep.subr.mxu0 0.0
    %689 = vmatpush1.msra.mxu0 0.0
    %690 = vmatprep.subr.mxu0 0.0
    %691 = vmatpush1.msra.mxu0 0.0
    %692 = vmatprep.subr.mxu0 0.0
    %693 = vmatpush1.msra.mxu0 0.0
    %694 = vmatprep.subr.mxu0 0.0
    %695 = vmatpush1.msra.mxu0 0.0
    %696 = vmatprep.subr.mxu0 0.0
    %697 = vmatpush1.msra.mxu0 0.0
    %698 = vmatprep.subr.mxu0 0.0
    %699 = vmatpush1.msra.mxu0 0.0
    %700 = vmatprep.subr.mxu0 0.0
    %701 = vmatpush1.msra.mxu0 0.0
    %702 = vmatprep.subr.mxu0 0.0
    %703 = vmatpush1.msra.mxu0 0.0
    %704 = vmatprep.subr.mxu0 0.0
    %705 = vmatpush1.msra.mxu0 0.0
    %706 = vmatprep.subr.mxu0 0.0
    %707 = vmatpush1.msra.mxu0 0.0
    %708 = vmatprep.subr.mxu0 0.0
    %709 = vmatpush1.msra.mxu0 0.0
    %710 = vmatprep.subr.mxu0 0.0
    %711 = vmatpush1.msra.mxu0 0.0
    %712 = vmatprep.subr.mxu0 0.0
    %713 = vmatpush1.msra.mxu0 0.0
    %714 = vmatprep.subr.mxu0 0.0
    %715 = vmatpush1.msra.mxu0 0.0
    %716 = vmatprep.subr.mxu0 0.0
    %717 = vmatpush1.msra.mxu0 0.0
    %718 = vmatprep.mubr.f32.mxu0 0.0
    %719 = vmatmul.mubr.f32.gmra.mrb[0].mxu0 %v524
    %v720 = vpop.f32.mrb[0].mxu0
    %v721 = vadd.f32 %v636, %v720
    %v722 = vpop.f32.mrb[0].mxu0
    %723 = vmatprep.mubr.f32.mxu0 0.0
    %724 = vmatmul.mubr.f32.gmra.mrb[0].mxu0 %v525
    %v725 = vpop.f32.mrb[0].mxu0
    %v726 = vadd.f32 %v641, %v725
    %v727 = vpop.f32.mrb[0].mxu0
    %728 = vmatprep.mubr.f32.mxu0 0.0
    %729 = vmatmul.mubr.f32.gmra.mrb[0].mxu0 %v526
    %v730 = vpop.f32.mrb[0].mxu0
    %v731 = vadd.f32 %v646, %v730
    %v732 = vpop.f32.mrb[0].mxu0
    %733 = vmatprep.mubr.f32.mxu0 0.0
    %734 = vmatmul.mubr.f32.gmra.mrb[0].mxu0 %v527
    %v735 = vpop.f32.mrb[0].mxu0
    %v736 = vadd.f32 %v651, %v735
    %v737 = vpop.f32.mrb[0].mxu0
    %738 = vdwg.mxu0
    %s739 = scalar_lea.vmem %s2, 256
    %v740 = vld [vmem:[%s739] sm:$0xff]
    %v741 = vld [vmem:[%s739 + $0x8] sm:$0xff]
    %v742 = vld [vmem:[%s739 + $0x10] sm:$0xff]
    %v743 = vld [vmem:[%s739 + $0x18] sm:$0xff]
    %v744 = vld [vmem:[%s739 + $0x20] sm:$0xff]
    %v745 = vld [vmem:[%s739 + $0x28] sm:$0xff]
    %v746 = vld [vmem:[%s739 + $0x30] sm:$0xff]
    %v747 = vld [vmem:[%s739 + $0x38] sm:$0xff]
    %v748 = vld [vmem:[%s739 + $0x40] sm:$0xff]
    %v749 = vld [vmem:[%s739 + $0x48] sm:$0xff]
    %v750 = vld [vmem:[%s739 + $0x50] sm:$0xff]
    %v751 = vld [vmem:[%s739 + $0x58] sm:$0xff]
    %v752 = vld [vmem:[%s739 + $0x60] sm:$0xff]
    %v753 = vld [vmem:[%s739 + $0x68] sm:$0xff]
    %v754 = vld [vmem:[%s739 + $0x70] sm:$0xff]
    %v755 = vld [vmem:[%s739 + $0x78] sm:$0xff]
    %756 = vmatprep.subr.mxu0 0.0
    %757 = vmatpush1.msra.mxu0 %v740
    %758 = vmatprep.subr.mxu0 0.0
    %759 = vmatpush1.msra.mxu0 %v741
    %760 = vmatprep.subr.mxu0 0.0
    %761 = vmatpush1.msra.mxu0 %v742
    %762 = vmatprep.subr.mxu0 0.0
    %763 = vmatpush1.msra.mxu0 %v743
    %764 = vmatprep.subr.mxu0 0.0
    %765 = vmatpush1.msra.mxu0 %v744
    %766 = vmatprep.subr.mxu0 0.0
    %767 = vmatpush1.msra.mxu0 %v745
    %768 = vmatprep.subr.mxu0 0.0
    %769 = vmatpush1.msra.mxu0 %v746
    %770 = vmatprep.subr.mxu0 0.0
    %771 = vmatpush1.msra.mxu0 %v747
    %772 = vmatprep.subr.mxu0 0.0
    %773 = vmatpush1.msra.mxu0 %v748
    %774 = vmatprep.subr.mxu0 0.0
    %775 = vmatpush1.msra.mxu0 %v749
    %776 = vmatprep.subr.mxu0 0.0
    %777 = vmatpush1.msra.mxu0 %v750
    %778 = vmatprep.subr.mxu0 0.0
    %779 = vmatpush1.msra.mxu0 %v751
    %780 = vmatprep.subr.mxu0 0.0
    %781 = vmatpush1.msra.mxu0 %v752
    %782 = vmatprep.subr.mxu0 0.0
    %783 = vmatpush1.msra.mxu0 %v753
    %784 = vmatprep.subr.mxu0 0.0
    %785 = vmatpush1.msra.mxu0 %v754
    %786 = vmatprep.subr.mxu0 0.0
    %787 = vmatpush1.msra.mxu0 %v755
    %788 = vmatprep.subr.mxu0 0.0
    %789 = vmatpush1.msra.mxu0 0.0
    %790 = vmatprep.subr.mxu0 0.0
    %791 = vmatpush1.msra.mxu0 0.0
    %792 = vmatprep.subr.mxu0 0.0
    %793 = vmatpush1.msra.mxu0 0.0
    %794 = vmatprep.subr.mxu0 0.0
    %795 = vmatpush1.msra.mxu0 0.0
    %796 = vmatprep.subr.mxu0 0.0
    %797 = vmatpush1.msra.mxu0 0.0
    %798 = vmatprep.subr.mxu0 0.0
    %799 = vmatpush1.msra.mxu0 0.0
    %800 = vmatprep.subr.mxu0 0.0
    %801 = vmatpush1.msra.mxu0 0.0
    %802 = vmatprep.subr.mxu0 0.0
    %803 = vmatpush1.msra.mxu0 0.0
    %804 = vmatprep.subr.mxu0 0.0
    %805 = vmatpush1.msra.mxu0 0.0
    %806 = vmatprep.subr.mxu0 0.0
    %807 = vmatpush1.msra.mxu0 0.0
    %808 = vmatprep.subr.mxu0 0.0
    %809 = vmatpush1.msra.mxu0 0.0
    %810 = vmatprep.subr.mxu0 0.0
    %811 = vmatpush1.msra.mxu0 0.0
    %812 = vmatprep.subr.mxu0 0.0
    %813 = vmatpush1.msra.mxu0 0.0
    %814 = vmatprep.subr.mxu0 0.0
    %815 = vmatpush1.msra.mxu0 0.0
    %816 = vmatprep.subr.mxu0 0.0
    %817 = vmatpush1.msra.mxu0 0.0
    %818 = vmatprep.subr.mxu0 0.0
    %819 = vmatpush1.msra.mxu0 0.0
    %820 = vmatprep.mubr.f32.mxu0 0.0
    %821 = vmatmul.mubr.f32.gmra.mrb[0].mxu0 %v532
    %v822 = vpop.f32.mrb[0].mxu0
    %v823 = vadd.f32 0.0, %v822
    %v824 = vpop.f32.mrb[0].mxu0
    %825 = vmatprep.mubr.f32.mxu0 0.0
    %826 = vmatmul.mubr.f32.gmra.mrb[0].mxu0 %v533
    %v827 = vpop.f32.mrb[0].mxu0
    %v828 = vadd.f32 0.0, %v827
    %v829 = vpop.f32.mrb[0].mxu0
    %830 = vmatprep.mubr.f32.mxu0 0.0
    %831 = vmatmul.mubr.f32.gmra.mrb[0].mxu0 %v534
    %v832 = vpop.f32.mrb[0].mxu0
    %v833 = vadd.f32 0.0, %v832
    %v834 = vpop.f32.mrb[0].mxu0
    %835 = vmatprep.mubr.f32.mxu0 0.0
    %836 = vmatmul.mubr.f32.gmra.mrb[0].mxu0 %v535
    %v837 = vpop.f32.mrb[0].mxu0
    %v838 = vadd.f32 0.0, %v837
    %v839 = vpop.f32.mrb[0].mxu0
    %840 = vdwg.mxu0
    %v841 = vadd.f32 %v721, %v823
    %v842 = vadd.f32 %v726, %v828
    %v843 = vadd.f32 %v731, %v833
    %v844 = vadd.f32 %v736, %v838
    %v845 = vld [vmem:[%s5] sm:$0x1]
    %v846 = vld [vmem:[%s6] sm:$0x1]
    %v847 = vadd.f32 %v841, %v842
    %v848 = vadd.f32 %v847, %v843
    %v849 = vadd.f32 %v848, %v844
    %v850 = vrot.slane %v849, 4
    %v851 = vadd.f32 %v849, %v850
    %v852 = vrot.slane %v851, 2
    %v853 = vadd.f32 %v851, %v852
    %v854 = vrot.slane %v853, 1
    %v855 = vadd.f32 %v853, %v854
    %856 = vrot.lane.b32.xlu0 %v855, 8
    %v857 = vpop.permute.xlu0 %856
    %v858 = vadd.f32 %v855, %v857
    %859 = vrot.lane.b32.xlu0 %v858, 16
    %v860 = vpop.permute.xlu0 %859
    %v861 = vadd.f32 %v858, %v860
    %862 = vrot.lane.b32.xlu0 %v861, 32
    %v863 = vpop.permute.xlu0 %862
    %v864 = vadd.f32 %v861, %v863
    %865 = vrot.lane.b32.xlu0 %v864, 64
    %v866 = vpop.permute.xlu0 %865
    %v867 = vadd.f32 %v864, %v866
    %v868 = vmul.f32 %v867, 0.001953125
    %v869 = vlaneseq
    %v870 = vshrl.u32 %v869, 7
    %v871 = vsub.s32 0, %v870
    %v872 = vrot.slane %v868, %v871
    %v873 = vsub.f32 %v841, %v872
    %v874 = vsub.f32 %v842, %v872
    %v875 = vsub.f32 %v843, %v872
    %v876 = vsub.f32 %v844, %v872
    %v877 = vmul.f32 %v873, %v873
    %v878 = vmul.f32 %v874, %v874
    %v879 = vmul.f32 %v875, %v875
    %v880 = vmul.f32 %v876, %v876
    %v881 = vadd.f32 %v877, %v878
    %v882 = vadd.f32 %v881, %v879
    %v883 = vadd.f32 %v882, %v880
    %v884 = vrot.slane %v883, 4
    %v885 = vadd.f32 %v883, %v884
    %v886 = vrot.slane %v885, 2
    %v887 = vadd.f32 %v885, %v886
    %v888 = vrot.slane %v887, 1
    %v889 = vadd.f32 %v887, %v888
    %890 = vrot.lane.b32.xlu0 %v889, 8
    %v891 = vpop.permute.xlu0 %890
    %v892 = vadd.f32 %v889, %v891
    %893 = vrot.lane.b32.xlu0 %v892, 16
    %v894 = vpop.permute.xlu0 %893
    %v895 = vadd.f32 %v892, %v894
    %896 = vrot.lane.b32.xlu0 %v895, 32
    %v897 = vpop.permute.xlu0 %896
    %v898 = vadd.f32 %v895, %v897
    %899 = vrot.lane.b32.xlu0 %v898, 64
    %v900 = vpop.permute.xlu0 %899
    %v901 = vadd.f32 %v898, %v900
    %v902 = vmul.f32 %v901, 0.001953125
    %v903 = vadd.f32 %v902, 1e-05
    %v904 = vrsqrt.pop %v903
    %v905 = vmul.f32 %v903, %v904
    %vm906 = vcmp.eq.f32.partialorder %v903, inf
    %v907 = vsel %vm906, %v903, %v905
    %vm908 = vcmp.eq.f32.partialorder %v903, 0.0
    %v909 = vand.u32 %v903, 2147483648
    %v910 = vsel %vm908, %v909, %v907
    %v911 = vrcp.pop %v910
    %v912 = vmul.f32 %v845, %v911
    %v914 = vlaneseq
    %v915 = vshrl.u32 %v914, 7
    %v916 = vsub.s32 0, %v915
    %v917 = vrot.slane %v912, %v916
    %v919 = vmul.f32 %v873, %v917
    %v920 = vmul.f32 %v874, %v917
    %v921 = vmul.f32 %v875, %v917
    %v922 = vmul.f32 %v876, %v917
    %v924 = vlaneseq
    %v925 = vshrl.u32 %v924, 7
    %v926 = vsub.s32 0, %v925
    %v927 = vrot.slane %v846, %v926
    %v929 = vadd.f32 %v919, %v927
    %v930 = vadd.f32 %v920, %v927
    %v931 = vadd.f32 %v921, %v927
    %v932 = vadd.f32 %v922, %v927
    %v933 = vmax.f32 %v929, 0.0
    %v934 = vmax.f32 %v930, 0.0
    %v935 = vmax.f32 %v931, 0.0
    %v936 = vmax.f32 %v932, 0.0
    %937 = vst [vmem:[%s7] sm:$0xff] %v933
    %938 = vst [vmem:[%s7 + $0x8] sm:$0xff] %v934
    %939 = vst [vmem:[%s7 + $0x10] sm:$0xff] %v935
    %940 = vst [vmem:[%s7 + $0x18] sm:$0xff] %v936
    // Predicated region
    $region34: #{double_conv.1} parent=1 // pred_check
      _
    $region35: #{double_conv.1} parent=1 // pred_check_branch
      %942 = sbr.rel (0) target = $region37
    $region36: #{double_conv.1} parent=1 // pred_region
      _
    $region37: #{double_conv.1} parent=1 // pred_fallthru
      _
    // Predicated region
    $region38: #{double_conv.1} parent=1 // pred_check
      _
    $region39: #{double_conv.1} parent=1 // pred_check_branch
      %944 = sbr.rel (0) target = $region41
    $region40: #{double_conv.1} parent=1 // pred_region
      _
    $region41: #{double_conv.1} parent=1 // pred_fallthru
      _
    %945 = vsyncpa [#allocation5], 1

</llo_original>
